<compile_context>
chip_gen: v5e
topology: v5e:2x2
jax: 0.10.0
libtpu: 0.0.40
codegen_flags: <defaults>
</compile_context>

<pallas_src>
import functools

import jax
import jax.numpy as jnp
from jax import lax
from jax.experimental import pallas as pl
from jax.experimental.pallas import tpu as pltpu


def _gaussian_encoder_kernel(z_dim, s_ref, w1_ref, b1_ref, wh_ref, bh_ref,
                             out_ref):
    # s_to_hidden + ReLU (f32 accumulation, f32 bias/activation math).
    hidden = jnp.dot(s_ref[...], w1_ref[...],
                     preferred_element_type=jnp.float32)
    hidden = jnp.maximum(hidden + b1_ref[...], 0.0)

    # Fused heads: one (TB, S) @ (S, 2Z) matmul instead of two (S, Z) ones.
    heads = jnp.dot(hidden.astype(wh_ref.dtype), wh_ref[...],
                    preferred_element_type=jnp.float32)
    heads = heads + bh_ref[...]

    # Columns [0, Z)  -> mu (identity)
    # Columns [Z, 2Z) -> sigma = 0.1 + 0.9 * sigmoid(.)
    # Lane-wise select keeps the single lane-dense (TB, 2Z) store.
    col = lax.broadcasted_iota(jnp.int32, heads.shape, dimension=1)
    sig = 0.1 + 0.9 * jax.nn.sigmoid(heads)
    out_ref[...] = jnp.where(col < z_dim, heads, sig).astype(out_ref.dtype)


def gaussian_encoder(s, params, *, compute_dtype=jnp.bfloat16,
                     block_batch=512):
    """GaussianEncoder forward pass as a single Pallas kernel.

    Args:
      s: (batch, s_dim) float32.
      params: dict with pre-transposed weights (in_features, out_features):
        w1 (S, S), b1 (S,), wmu (S, Z), bmu (Z,), wsig (S, Z), bsig (Z,)
      compute_dtype: dtype for the MXU inputs (HBM-facing traffic).
      block_batch: batch tile size (rounded to hardware-friendly values).

    Returns:
      (mu, sigma), each (batch, z_dim) float32 — parameters of Normal(mu, sigma).
    """
    B, S = s.shape
    Z = params["wmu"].shape[1]

    # ---- pack / cast parameters (wrapper-side, once) ------------------------
    w1 = params["w1"].astype(compute_dtype)                      # (S, S)
    w_heads = jnp.concatenate(
        [params["wmu"], params["wsig"]], axis=1).astype(compute_dtype)  # (S, 2Z)
    b1 = params["b1"].reshape(1, S).astype(jnp.float32)          # (1, S)
    b_heads = jnp.concatenate(
        [params["bmu"], params["bsig"]]).reshape(1, 2 * Z).astype(jnp.float32)

    s_in = s.astype(compute_dtype)

    # ---- batch tiling --------------------------------------------------------
    TB = block_batch
    if B < TB:
        TB = max(8, ((B + 7) // 8) * 8)       # single (8-aligned) block
    B_pad = pl.cdiv(B, TB) * TB
    if B_pad != B:
        s_in = jnp.pad(s_in, ((0, B_pad - B), (0, 0)))
    grid = (B_pad // TB,)

    batch_spec = lambda shape: pl.BlockSpec(shape, lambda i: (i, 0))
    resident_spec = lambda shape: pl.BlockSpec(shape, lambda i: (0, 0))

    out = pl.pallas_call(
        functools.partial(_gaussian_encoder_kernel, Z),
        out_shape=jax.ShapeDtypeStruct((B_pad, 2 * Z), jnp.float32),
        grid=grid,
        in_specs=[
            batch_spec((TB, S)),        # s tile streams over batch
            resident_spec((S, S)),      # W1 resident
            resident_spec((1, S)),      # b1 resident
            resident_spec((S, 2 * Z)),  # fused head weights resident
            resident_spec((1, 2 * Z)),  # fused head bias resident
        ],
        out_specs=batch_spec((TB, 2 * Z)),
        compiler_params=pltpu.CompilerParams(
            dimension_semantics=("parallel",)),
    )(s_in, w1, b1, w_heads, b_heads)

    out = out[:B]
    mu = out[:, :Z]
    sigma = out[:, Z:]
    return mu, sigma


def init_params(key, s_dim, z_dim):
    """Deterministic init mimicking nn.Linear default (+/- 1/sqrt(fan_in)).

    Weights are stored transposed: (in_features, out_features).
    """
    ks = jax.random.split(key, 6)

    def lin(kw, kb, fan_in, fan_out):
        b = 1.0 / jnp.sqrt(fan_in)
        w = jax.random.uniform(kw, (fan_in, fan_out), jnp.float32, -b, b)
        bias = jax.random.uniform(kb, (fan_out,), jnp.float32, -b, b)
        return w, bias

    w1, b1 = lin(ks[0], ks[1], s_dim, s_dim)
    wmu, bmu = lin(ks[2], ks[3], s_dim, z_dim)
    wsig, bsig = lin(ks[4], ks[5], s_dim, z_dim)
    return {"w1": w1, "b1": b1, "wmu": wmu, "bmu": bmu,
            "wsig": wsig, "bsig": bsig}


if __name__ == "__main__":
    key = jax.random.PRNGKey(0)
    k_param, k_s = jax.random.split(key)

    batch, s_dim, z_dim = 8, 32, 16
    params = init_params(k_param, s_dim, z_dim)
    s = jax.random.normal(k_s, (batch, s_dim), dtype=jnp.float32)

    mu, sigma = gaussian_encoder(s, params)
    jax.block_until_ready((mu, sigma))

    # --- reference with the same bf16 MXU-input casts (f32 accumulation) -----
    cast = lambda x: x.astype(jnp.bfloat16).astype(jnp.float32)
    s_c = cast(s)
    w1_c = cast(params["w1"])
    wmu_c = cast(params["wmu"])
    wsig_c = cast(params["wsig"])
    hidden_ref = jnp.maximum(s_c @ w1_c + params["b1"], 0.0)
    hidden_c = cast(hidden_ref)
    mu_ref = hidden_c @ wmu_c + params["bmu"]
    sigma_ref = 0.1 + 0.9 * jax.nn.sigmoid(hidden_c @ wsig_c + params["bsig"])

    assert jnp.allclose(mu, mu_ref, atol=1e-3, rtol=1e-3), "mu mismatch"
    assert jnp.allclose(sigma, sigma_ref, atol=1e-3, rtol=1e-3), "sigma mismatch"

    # --- loose sanity check vs. full-f32 semantics ----------------------------
    hidden_f32 = jnp.maximum(s @ params["w1"] + params["b1"], 0.0)
    mu_f32 = hidden_f32 @ params["wmu"] + params["bmu"]
    sigma_f32 = 0.1 + 0.9 * jax.nn.sigmoid(
        hidden_f32 @ params["wsig"] + params["bsig"])
    assert jnp.allclose(mu, mu_f32, atol=5e-2), "mu far from f32 reference"
    assert jnp.allclose(sigma, sigma_f32, atol=5e-2), "sigma far from f32 reference"
    assert bool(jnp.all(sigma > 0.1)) and bool(jnp.all(sigma < 1.0)), \
        "sigma out of (0.1, 1.0) range"

    # TODO(synk): torch.distributions.Normal object itself has no Pallas
    # equivalent; (mu, sigma) are returned as its parameters.
    print("KERNEL_OK")
</pallas_src>

<mosaic_0001>
module attributes {stable_mosaic.version = 11 : i64} {
  func.func @_gaussian_encoder_kernel(%arg0: i32, %arg1: memref<8x32xbf16, #tpu.memory_space<vmem>>, %arg2: memref<32x32xbf16, #tpu.memory_space<vmem>>, %arg3: memref<1x32xf32, #tpu.memory_space<vmem>>, %arg4: memref<32x32xbf16, #tpu.memory_space<vmem>>, %arg5: memref<1x32xf32, #tpu.memory_space<vmem>>, %arg6: memref<8x32xf32, #tpu.memory_space<vmem>>) attributes {dimension_semantics = [#tpu.dimension_semantics<parallel>], iteration_bounds = array<i64: 1>, scalar_prefetch = 0 : i64, scratch_operands = 0 : i64, tpu.core_type = #tpu.core_type<tc>, window_params = [{transform_indices = @transform_0, window_bounds = array<i64: 8, 32>}, {pipeline_mode = #tpu.pipeline_mode<synchronous>, transform_indices = @transform_1, window_bounds = array<i64: 32, 32>}, {pipeline_mode = #tpu.pipeline_mode<synchronous>, transform_indices = @transform_2, window_bounds = array<i64: 1, 32>}, {pipeline_mode = #tpu.pipeline_mode<synchronous>, transform_indices = @transform_3, window_bounds = array<i64: 32, 32>}, {pipeline_mode = #tpu.pipeline_mode<synchronous>, transform_indices = @transform_4, window_bounds = array<i64: 1, 32>}, {transform_indices = @transform_5, window_bounds = array<i64: 8, 32>}]} {
    %c0 = arith.constant 0 : index
    %c0_0 = arith.constant 0 : index
    %0 = vector.load %arg1[%c0, %c0_0] : memref<8x32xbf16, #tpu.memory_space<vmem>>, vector<8x32xbf16>
    %c0_1 = arith.constant 0 : index
    %c0_2 = arith.constant 0 : index
    %1 = vector.load %arg2[%c0_1, %c0_2] : memref<32x32xbf16, #tpu.memory_space<vmem>>, vector<32x32xbf16>
    %cst = arith.constant dense<0.000000e+00> : vector<8x32xf32>
    %2 = tpu.matmul %0, %1, %cst {dimension_numbers = #tpu.dot_dimension_numbers<[1], [0], [0], [1], [0, 0, 1, 1], [], []>} : vector<8x32xbf16>, vector<32x32xbf16>, vector<8x32xf32> -> vector<8x32xf32>
    %c0_3 = arith.constant 0 : index
    %c0_4 = arith.constant 0 : index
    %3 = vector.load %arg3[%c0_3, %c0_4] : memref<1x32xf32, #tpu.memory_space<vmem>>, vector<1x32xf32>
    %4 = vector.broadcast %3 : vector<1x32xf32> to vector<8x32xf32>
    %5 = arith.addf %2, %4 : vector<8x32xf32>
    %cst_5 = arith.constant 0.000000e+00 : f32
    %6 = vector.broadcast %cst_5 : f32 to vector<8x32xf32>
    %7 = arith.maximumf %5, %6 : vector<8x32xf32>
    %8 = arith.truncf %7 : vector<8x32xf32> to vector<8x32xbf16>
    %c0_6 = arith.constant 0 : index
    %c0_7 = arith.constant 0 : index
    %9 = vector.load %arg4[%c0_6, %c0_7] : memref<32x32xbf16, #tpu.memory_space<vmem>>, vector<32x32xbf16>
    %cst_8 = arith.constant dense<0.000000e+00> : vector<8x32xf32>
    %10 = tpu.matmul %8, %9, %cst_8 {dimension_numbers = #tpu.dot_dimension_numbers<[1], [0], [0], [1], [0, 0, 1, 1], [], []>} : vector<8x32xbf16>, vector<32x32xbf16>, vector<8x32xf32> -> vector<8x32xf32>
    %c0_9 = arith.constant 0 : index
    %c0_10 = arith.constant 0 : index
    %11 = vector.load %arg5[%c0_9, %c0_10] : memref<1x32xf32, #tpu.memory_space<vmem>>, vector<1x32xf32>
    %12 = vector.broadcast %11 : vector<1x32xf32> to vector<8x32xf32>
    %13 = arith.addf %10, %12 : vector<8x32xf32>
    %14 = tpu.iota {dimensions = array<i32: 1>} : vector<8x32xi32>
    %15 = arith.negf %13 : vector<8x32xf32>
    %16 = math.exp %15 : vector<8x32xf32>
    %cst_11 = arith.constant 1.000000e+00 : f32
    %17 = vector.broadcast %cst_11 : f32 to vector<8x32xf32>
    %18 = arith.addf %17, %16 : vector<8x32xf32>
    %19 = arith.divf %17, %18 : vector<8x32xf32>
    %cst_12 = arith.constant 0.899999976 : f32
    %20 = vector.broadcast %cst_12 : f32 to vector<8x32xf32>
    %21 = arith.mulf %20, %19 : vector<8x32xf32>
    %cst_13 = arith.constant 1.000000e-01 : f32
    %22 = vector.broadcast %cst_13 : f32 to vector<8x32xf32>
    %23 = arith.addf %22, %21 : vector<8x32xf32>
    %c16_i32 = arith.constant 16 : i32
    %24 = vector.broadcast %c16_i32 : i32 to vector<8x32xi32>
    %25 = arith.cmpi slt, %14, %24 : vector<8x32xi32>
    %26 = arith.select %25, %13, %23 : vector<8x32xi1>, vector<8x32xf32>
    %c0_14 = arith.constant 0 : index
    %c0_15 = arith.constant 0 : index
    %27 = vector.load %arg6[%c0_14, %c0_15] : memref<8x32xf32, #tpu.memory_space<vmem>>, vector<8x32xf32>
    tpu.vector_store %arg6[%c0_14, %c0_15], %26 {strides = array<i32>} : memref<8x32xf32, #tpu.memory_space<vmem>>, vector<8x32xf32>,
    return
  }
  func.func @transform_0(%arg0: i32) -> (i32, i32) {
    %c0_i32 = arith.constant 0 : i32
    %c0_i32_0 = arith.constant 0 : i32
    return %arg0, %c0_i32 : i32, i32
  }
  func.func @transform_1(%arg0: i32) -> (i32, i32) {
    %c0_i32 = arith.constant 0 : i32
    %c0_i32_0 = arith.constant 0 : i32
    %c0_i32_1 = arith.constant 0 : i32
    return %c0_i32, %c0_i32_0 : i32, i32
  }
  func.func @transform_2(%arg0: i32) -> (i32, i32) {
    %c0_i32 = arith.constant 0 : i32
    %c0_i32_0 = arith.constant 0 : i32
    %c0_i32_1 = arith.constant 0 : i32
    return %c0_i32, %c0_i32_0 : i32, i32
  }
  func.func @transform_3(%arg0: i32) -> (i32, i32) {
    %c0_i32 = arith.constant 0 : i32
    %c0_i32_0 = arith.constant 0 : i32
    %c0_i32_1 = arith.constant 0 : i32
    return %c0_i32, %c0_i32_0 : i32, i32
  }
  func.func @transform_4(%arg0: i32) -> (i32, i32) {
    %c0_i32 = arith.constant 0 : i32
    %c0_i32_0 = arith.constant 0 : i32
    %c0_i32_1 = arith.constant 0 : i32
    return %c0_i32, %c0_i32_0 : i32, i32
  }
  func.func @transform_5(%arg0: i32) -> (i32, i32) {
    %c0_i32 = arith.constant 0 : i32
    %c0_i32_0 = arith.constant 0 : i32
    return %arg0, %c0_i32 : i32, i32
  }
}

</mosaic_0001>

<llo_original>
// kernel: tpu_custom_call.1
$region0: #{tpu_custom_call.1}
  #allocation0 [shape = 'u32[]', space=smem, size = 0x4, offset = 0x4, fixed_abs, tag = 'smem constant byte address 0x4 - core index']
  #allocation1 [shape = 'u32[72,128]{1,0:T(1,128)}', space=vmem, size = 0x9000, scoped, tag = 'internal scratch']
  %s0 = inlined_call_operand.hbm [shape: bf16[8,32], index: 0, kind: input, shape index: {}]
  %s1 = inlined_call_operand.hbm [shape: bf16[32,32], index: 1, kind: input, shape index: {}]
  %s2 = inlined_call_operand.vmem [shape: f32[1,32], index: 2, kind: input, shape index: {}]
  %s3 = inlined_call_operand.hbm [shape: bf16[32,32], index: 3, kind: input, shape index: {}]
  %s4 = inlined_call_operand.vmem [shape: f32[1,32], index: 4, kind: input, shape index: {}]
  %s5 = inlined_call_operand.hbm [shape: f32[8,32], index: 5, kind: output, shape index: {}]
  %s6 = sld [smem:[#allocation0]]
  $region42: #{tpu_custom_call.1} parent=0
    _
  %s8 = ssub.s32 1, %s6
  %s9 = scalar_select 0, %s8, %s6
  $region1: #{tpu_custom_call.1} parent=0
    #allocation2 [shape = 'u8[2048]{0}', space=vmem, size = 0x800, scoped, tag = 'input window, operand 0, single buffered']
    #allocation3 [shape = 's32[1]{0}', space=sflag, size = 0x4, scoped, tag = 'scoped memory for tpu_custom_call.1']
    #allocation4 [shape = 's32[1]{0}', space=sflag, size = 0x4, scoped, tag = 'scoped memory for tpu_custom_call.1']
    #allocation5 [shape = 'u8[8192]{0}', space=vmem, size = 0x2000, scoped, tag = 'input window, operand 1, single buffered']
    #allocation6 [shape = 's32[1]{0}', space=sflag, size = 0x4, scoped, tag = 'scoped memory for tpu_custom_call.1']
    #allocation7 [shape = 'u8[8192]{0}', space=vmem, size = 0x2000, scoped, tag = 'input window, operand 3, single buffered']
    #allocation8 [shape = 'u8[4096]{0}', space=vmem, size = 0x1000, scoped, tag = 'output window, operand 0, single buffered']
    %10 = vsyncpa [#allocation3], 0
    %11 = vsyncpa [#allocation6], 0
    %12 = vsyncpa [#allocation4], 0
    // Predicated region
    $region2: #{tpu_custom_call.1} parent=1 // pred_check
      _
    $region3: #{tpu_custom_call.1} parent=1 // pred_check_branch
      %14 = sbr.rel (0) target = $region5
    $region4: #{tpu_custom_call.1} parent=1 // pred_region
      %16 = vsyncadd [#allocation3], 0
      %s18 = sshll.u32 %s0, 4
      %s19 = int_to_ptr.hbm [resolvable:$true] %s18
      %s20 = sshll.u32 [#allocation2], 4
      %s21 = int_to_ptr.vmem [resolvable:$true] %s20
      %23 = dma.hbm_to_vmem [thread:$0]  %s19, 64, %s21, [#allocation3]
    $region5: #{tpu_custom_call.1} parent=1 // pred_fallthru
      _
    // Predicated region
    $region6: #{tpu_custom_call.1} parent=1 // pred_check
      _
    $region7: #{tpu_custom_call.1} parent=1 // pred_check_branch
      %25 = sbr.rel (0) target = $region9
    $region8: #{tpu_custom_call.1} parent=1 // pred_region
      %27 = vsyncadd [#allocation6], 0
      %s28 = sshll.u32 %s1, 4
      %s29 = int_to_ptr.hbm [resolvable:$true] %s28
      %s30 = sshll.u32 [#allocation5], 4
      %s31 = int_to_ptr.vmem [resolvable:$true] %s30
      %36 = dma.hbm_to_vmem [thread:$0]  %s29, 256, %s31, [#allocation6], 64, 64, 4
    $region9: #{tpu_custom_call.1} parent=1 // pred_fallthru
      _
    // Predicated region
    $region10: #{tpu_custom_call.1} parent=1 // pred_check
      _
    $region11: #{tpu_custom_call.1} parent=1 // pred_check_branch
      %38 = sbr.rel (0) target = $region13
    $region12: #{tpu_custom_call.1} parent=1 // pred_region
      _
    $region13: #{tpu_custom_call.1} parent=1 // pred_fallthru
      _
    // Predicated region
    $region14: #{tpu_custom_call.1} parent=1 // pred_check
      _
    $region15: #{tpu_custom_call.1} parent=1 // pred_check_branch
      %40 = sbr.rel (0) target = $region17
    $region16: #{tpu_custom_call.1} parent=1 // pred_region
      %42 = vsyncadd [#allocation6], 0
      %s43 = sshll.u32 %s3, 4
      %s44 = int_to_ptr.hbm [resolvable:$true] %s43
      %s45 = sshll.u32 [#allocation7], 4
      %s46 = int_to_ptr.vmem [resolvable:$true] %s45
      %51 = dma.hbm_to_vmem [thread:$0]  %s44, 256, %s46, [#allocation6], 64, 64, 4
    $region17: #{tpu_custom_call.1} parent=1 // pred_fallthru
      _
    // Predicated region
    $region18: #{tpu_custom_call.1} parent=1 // pred_check
      _
    $region19: #{tpu_custom_call.1} parent=1 // pred_check_branch
      %53 = sbr.rel (0) target = $region21
    $region20: #{tpu_custom_call.1} parent=1 // pred_region
      _
    $region21: #{tpu_custom_call.1} parent=1 // pred_fallthru
      _
    // Predicated region
    $region22: #{tpu_custom_call.1} parent=1 // pred_check
      _
    $region23: #{tpu_custom_call.1} parent=1 // pred_check_branch
      %55 = sbr.rel (0) target = $region25
    $region24: #{tpu_custom_call.1} parent=1 // pred_region
      %57 = dma.done [#allocation3], 64
    $region25: #{tpu_custom_call.1} parent=1 // pred_fallthru
      _
    // Predicated region
    $region26: #{tpu_custom_call.1} parent=1 // pred_check
      _
    $region27: #{tpu_custom_call.1} parent=1 // pred_check_branch
      %59 = sbr.rel (0) target = $region29
    $region28: #{tpu_custom_call.1} parent=1 // pred_region
      %61 = dma.done [#allocation6], 256
    $region29: #{tpu_custom_call.1} parent=1 // pred_fallthru
      _
    // Predicated region
    $region30: #{tpu_custom_call.1} parent=1 // pred_check
      _
    $region31: #{tpu_custom_call.1} parent=1 // pred_check_branch
      %63 = sbr.rel (0) target = $region33
    $region32: #{tpu_custom_call.1} parent=1 // pred_region
      %65 = dma.done [#allocation6], 256
    $region33: #{tpu_custom_call.1} parent=1 // pred_fallthru
      _
    %v67 = vld [vmem:[#allocation2] sm:$0xf]
    %v68 = vld [vmem:[#allocation5] sm:$0xf]
    %v69 = vld [vmem:[#allocation5 + $0x4] sm:$0xf]
    %v70 = vld [vmem:[#allocation5 + $0x8] sm:$0xf]
    %v71 = vld [vmem:[#allocation5 + $0xc] sm:$0xf]
    %v72 = vld [vmem:[%s2] sm:$0x1]
    %v74 = vperm.slane %v72, 0
    %v80 = vunpack.c.l.b16 %v68
    %v81 = vunpack.c.l.b16 %v69
    %v82 = vunpack.c.l.b16 %v70
    %v83 = vunpack.c.l.b16 %v71
    %v84 = vpack.c.b16 %v81, %v80
    %v85 = vpack.c.b16 %v83, %v82
    %vm88 = vcmask 261120
    %v90 = vsel %vm88, %v67, 0
    %92 = vmatpush.bf16.msra.mxu0 0
    %93 = vmatpush.bf16.msra.mxu0 0
    %94 = vmatpush.bf16.msra.mxu0 0
    %95 = vmatpush.bf16.msra.mxu0 0
    %96 = vmatpush.bf16.msra.mxu0 0
    %97 = vmatpush.bf16.msra.mxu0 0
    %98 = vmatpush.bf16.msra.mxu0 %v85
    %99 = vmatpush.bf16.msra.mxu0 %v84
    %100 = vmatmul.bf16.gmra.mxu0 %v90
    %v101 = vpop.f32.mrf.mxu0
    %v102 = vadd.f32 %v74, %v101
    %v103 = vpop.f32.mrf.mxu0
    %104 = vdwg.mxu0
    %v105 = vmax.f32 %v102, 0.0
    %v106 = vpack.c.bf16 %v105, %v105
    %v107 = vld [vmem:[#allocation7] sm:$0xf]
    %v108 = vld [vmem:[#allocation7 + $0x4] sm:$0xf]
    %v109 = vld [vmem:[#allocation7 + $0x8] sm:$0xf]
    %v110 = vld [vmem:[#allocation7 + $0xc] sm:$0xf]
    %v111 = vld [vmem:[%s4] sm:$0x1]
    %v113 = vperm.slane %v111, 0
    %v119 = vunpack.c.l.b16 %v107
    %v120 = vunpack.c.l.b16 %v108
    %v121 = vunpack.c.l.b16 %v109
    %v122 = vunpack.c.l.b16 %v110
    %v123 = vpack.c.b16 %v120, %v119
    %v124 = vpack.c.b16 %v122, %v121
    %v128 = vsel %vm88, %v106, 0
    %130 = vmatpush.bf16.msra.mxu0 0
    %131 = vmatpush.bf16.msra.mxu0 0
    %132 = vmatpush.bf16.msra.mxu0 0
    %133 = vmatpush.bf16.msra.mxu0 0
    %134 = vmatpush.bf16.msra.mxu0 0
    %135 = vmatpush.bf16.msra.mxu0 0
    %136 = vmatpush.bf16.msra.mxu0 %v124
    %137 = vmatpush.bf16.msra.mxu0 %v123
    %138 = vmatmul.bf16.gmra.mxu0 %v128
    %v139 = vpop.f32.mrf.mxu0
    %v140 = vadd.f32 %v113, %v139
    %v141 = vpop.f32.mrf.mxu0
    %142 = vdwg.mxu0
    %v143 = vlaneseq
    %v144 = vand.u32 %v143, 127
    %v145 = vxor.u32 %v140, 2147483648
    %v146 = vmul.f32 %v145, 1.442695
    %v147 = vpow.pop %v146
    %v148 = vadd.f32 %v147, 1.0
    %v149 = vrcp.pop %v148
    %v150 = vmul.f32 %v148, %v149
    %v151 = vsub.f32 1.0, %v150
    %v152 = vmul.f32 %v149, %v151
    %v153 = vadd.f32 %v149, %v152
    %vm154 = vweird.f32 %v148
    %vm155 = vweird.f32 %v149
    %vm156 = vmor %vm154, %vm155
    %v157 = vsel %vm156, %v149, %v153
    %v158 = vand.u32 2147483647, %v148
    %vm159 = vcmp.eq.f32.partialorder %v158, 8.507059e+37
    %v160 = vand.u32 %v148, 2147483648
    %v161 = vor.u32 1.1754944e-38, %v160
    %v162 = vsel %vm159, %v161, %v157
    %v163 = vmul.f32 1.0, %v162
    %v164 = vmul.f32 %v163, 0.9
    %v165 = vadd.f32 %v164, 0.1
    %vm166 = vcmp.lt.s32.totalorder %v144, 16
    %v167 = vsel %vm166, %v140, %v165
    %168 = vst.msk [vmem:[#allocation8] sm:$0xff] %vm88, %v167
    // Predicated region
    $region34: #{tpu_custom_call.1} parent=1 // pred_check
      _
    $region35: #{tpu_custom_call.1} parent=1 // pred_check_branch
      %170 = sbr.rel (0) target = $region37
    $region36: #{tpu_custom_call.1} parent=1 // pred_region
      %172 = vsyncadd [#allocation4], 0
      %s174 = sshll.u32 [#allocation8], 4
      %s175 = int_to_ptr.vmem [resolvable:$true] %s174
      %s176 = sshll.u32 %s5, 4
      %s177 = int_to_ptr.hbm [resolvable:$true] %s176
      %179 = dma.vmem_to_hbm [thread:$0]  %s175, 128, %s177, [#allocation4]
    $region37: #{tpu_custom_call.1} parent=1 // pred_fallthru
      _
    // Predicated region
    $region38: #{tpu_custom_call.1} parent=1 // pred_check
      _
    $region39: #{tpu_custom_call.1} parent=1 // pred_check_branch
      %181 = sbr.rel (0) target = $region41
    $region40: #{tpu_custom_call.1} parent=1 // pred_region
      %183 = dma.done [#allocation4], 128
    $region41: #{tpu_custom_call.1} parent=1 // pred_fallthru
      _
    %184 = vsyncpa [#allocation3], 1
    %185 = vsyncpa [#allocation6], 1
    %186 = vsyncpa [#allocation4], 1

</llo_original>
